<compile_context>
chip_gen: v5e
topology: v5e:2x2
jax: 0.10.0
libtpu: 0.0.40
codegen_flags: <defaults>
</compile_context>

<pallas_src>
import functools
import math

import jax
import jax.numpy as jnp
from jax.experimental import pallas as pl
from jax.experimental.pallas import tpu as pltpu


_MIB = 1024 * 1024
_DMA_PATH_MIN_BYTES = 16 * _MIB     # "auto": switch to raw HBM->HBM DMA above this
_DMA_CHUNK_BYTES = 8 * _MIB         # per-DMA granularity on the direct path
_DMA_MAX_INFLIGHT = 4               # DMAs in flight on the direct path


@functools.lru_cache(maxsize=None)
def _vmem_budget():
    """Return (vmem_limit_bytes, target_block_bytes), gated on TPU generation.

    v5e/v6e (128 MiB physical VMEM): 64 MiB scoped limit, 8 MiB blocks.
    v7x (64 MiB physical VMEM) or unknown: 32 MiB scoped limit, 4 MiB blocks
    (2x in + 2x out double buffers = 16 MiB live -> comfortable headroom).
    """
    vmem_bytes = 64 * _MIB  # conservative default (v7x-sized)
    try:
        info = pltpu.get_tpu_info()
        probed = int(getattr(info, "vmem_capacity_bytes", 0) or 0)
        if probed > 0:
            vmem_bytes = probed
    except Exception:
        pass
    if vmem_bytes >= 128 * _MIB:        # v5e / v6e
        return 64 * _MIB, 8 * _MIB
    return 32 * _MIB, 4 * _MIB          # v7x / unknown


# ----------------------------------------------------------------------------
# Path 1: pipelined VMEM staging copy (BlockSpec auto-pipelining).
# ----------------------------------------------------------------------------
def _copy_kernel(x_ref, o_ref):
    # Bare identity copy of the current block (pure DMA-bound memcpy).
    # No casts / masks / reshapes in the body; default Buffered(2) depth.
    o_ref[...] = x_ref[...]


def _pallas_copy_2d(x2d, block_r, block_c, *, donate, vmem_limit):
    """Identity copy of a 2-D slab through VMEM with the given block shape."""
    r, c = x2d.shape
    grid = (pl.cdiv(r, block_r), pl.cdiv(c, block_c))
    alias_kwargs = {}
    if donate:
        # Only alias when the caller actually donates x; otherwise XLA inserts
        # a defensive copy of the input before the kernel (hidden 2x traffic).
        alias_kwargs["input_output_aliases"] = {0: 0}
    return pl.pallas_call(
        _copy_kernel,
        out_shape=jax.ShapeDtypeStruct((r, c), x2d.dtype),
        grid_spec=pltpu.PrefetchScalarGridSpec(
            num_scalar_prefetch=0,
            grid=grid,
            in_specs=[pl.BlockSpec((block_r, block_c), lambda i, j: (i, j))],
            out_specs=pl.BlockSpec((block_r, block_c), lambda i, j: (i, j)),
        ),
        compiler_params=pltpu.CompilerParams(
            dimension_semantics=("parallel", "parallel"),
            vmem_limit_bytes=vmem_limit,
        ),
        **alias_kwargs,
    )(x2d)


# ----------------------------------------------------------------------------
# Path 2: chunked direct HBM->HBM DMA (no VMEM staging).
# ----------------------------------------------------------------------------
def _make_dma_copy_kernel(row_chunks, n_slots):
    """row_chunks: static tuple of (row_start, row_size) covering the slab."""

    def kernel(x_ref, o_ref, sems):
        n_chunks = len(row_chunks)

        def make(idx):
            s, sz = row_chunks[idx]
            return pltpu.make_async_copy(
                x_ref.at[pl.ds(s, sz)],
                o_ref.at[pl.ds(s, sz)],
                sems.at[idx % n_slots],
            )

        # Prime up to n_slots DMAs, then wait-one / start-next.
        for i in range(min(n_slots, n_chunks)):
            make(i).start()
        for i in range(n_chunks):
            make(i).wait()
            j = i + n_slots
            if j < n_chunks:
                make(j).start()

    return kernel


def _pallas_dma_copy_2d(x2d, *, vmem_limit):
    """Identity copy of a 2-D slab via direct HBM->HBM DMA (bypasses VMEM)."""
    r, c = x2d.shape
    itemsize = jnp.dtype(x2d.dtype).itemsize
    chunk_r = max(1, _DMA_CHUNK_BYTES // max(1, c * itemsize))
    chunk_r = min(chunk_r, r)
    row_chunks = tuple(
        (s, min(chunk_r, r - s)) for s in range(0, r, chunk_r)
    )
    n_slots = max(1, min(_DMA_MAX_INFLIGHT, len(row_chunks)))
    return pl.pallas_call(
        _make_dma_copy_kernel(row_chunks, n_slots),
        out_shape=jax.ShapeDtypeStruct((r, c), x2d.dtype),
        in_specs=[pl.BlockSpec(memory_space=pl.ANY)],
        out_specs=pl.BlockSpec(memory_space=pl.ANY),
        scratch_shapes=[pltpu.SemaphoreType.DMA((n_slots,))],
        compiler_params=pltpu.CompilerParams(vmem_limit_bytes=vmem_limit),
    )(x2d)


# ----------------------------------------------------------------------------
# Public wrapper: PyTorch Flatten.forward semantics.
# ----------------------------------------------------------------------------
def flatten(x, *, materialize=False, method="auto", donate=False):
    """Equivalent of torch `x.view(x.size(0), -1)` for a contiguous input.

    Default path is metadata-only (zero-cost reshape). `materialize=True`
    forces an explicit copy through a Pallas kernel.
      method: "auto" | "pipeline" (VMEM staging) | "dma" (direct HBM->HBM).
      donate: set True only if the caller donates x (enables output aliasing
              on the pipeline path without a hidden defensive input copy).
    """
    n = x.shape[0]
    f = math.prod(x.shape[1:]) if x.ndim > 1 else 1

    # Glue: row-major reshape — this IS the flatten (no data movement).
    y = x.reshape(n, f)
    if not materialize:
        return y

    itemsize = jnp.dtype(x.dtype).itemsize
    total = n * f
    total_bytes = total * itemsize
    vmem_limit, target_block_bytes = _vmem_budget()

    if method == "auto":
        method = "dma" if total_bytes >= _DMA_PATH_MIN_BYTES else "pipeline"

    if method == "dma":
        # Pure HBM->HBM memcpy: bound only by HBM read+write BW, frees VMEM.
        return _pallas_dma_copy_2d(y, vmem_limit=vmem_limit).reshape(n, f)

    # --- pipelined VMEM staging copy ---
    sublane = 8 * max(1, 4 // itemsize)  # 8 (f32), 16 (bf16), 32 (int8)

    # Prefer a lane/sublane-dense slab (rows, lane): lane a multiple of 128,
    # ideally leaving >= `sublane` rows so vregs are fully populated.
    lane = None
    for cand in (1024, 512, 256, 128):
        if total % cand == 0 and total // cand >= sublane:
            lane = cand
            break
    if lane is None:
        for cand in (1024, 512, 256, 128):
            if total % cand == 0:
                lane = cand
                break

    if lane is not None:
        rows = total // lane
        slab = y.reshape(rows, lane)
        # Row tile: multiple of the sublane quantum, targeting the per-gen
        # block budget (4 MiB on v7x, 8 MiB on v5e/v6e).
        tile_r = target_block_bytes // (lane * itemsize)
        tile_r = max(sublane, (tile_r // sublane) * sublane)
        if tile_r >= rows:
            if rows >= 2 * sublane:
                # Keep >= 2 blocks on the parallel axis so both v7x TCs work.
                tile_r = max(sublane, ((rows // 2) // sublane) * sublane)
            else:
                tile_r = rows  # single full block (equals array dim -> legal)
        out = _pallas_copy_2d(slab, tile_r, lane, donate=donate,
                              vmem_limit=vmem_limit)
        return out.reshape(n, f)

    # Total element count not a multiple of 128: tile BOTH axes of the (n, f)
    # slab so block bytes stay bounded regardless of batch size.
    if f >= 128:
        tile_f = min((f // 128) * 128, 2048)   # lane-dense, ragged tail masked
    else:
        # Cold path: output last-dim < 128 -> masked partial stores. A
        # lane-dense prefix + remainder split would avoid vst.msk but only
        # matters if this path is ever hot.
        tile_f = f
    tile_r = target_block_bytes // max(1, tile_f * itemsize)
    tile_r = max(sublane, (tile_r // sublane) * sublane)
    if tile_r >= n:
        if n >= 2 * sublane:
            tile_r = max(sublane, ((n // 2) // sublane) * sublane)
        else:
            tile_r = n
    return _pallas_copy_2d(y, tile_r, tile_f, donate=donate,
                           vmem_limit=vmem_limit)


if __name__ == "__main__":
    key = jax.random.PRNGKey(0)
    # Small NCHW input consistent with the module's conv-feature use.
    x = jax.random.normal(key, (2, 4, 16, 16), dtype=jnp.float32)

    # Reference semantics of x.view(N, -1).
    y_ref = x.reshape(x.shape[0], -1)

    # Production fast path: metadata-only view (recommended; zero HBM traffic).
    y_view = flatten(x)

    # Pallas paths: pipelined VMEM staging copy and direct HBM->HBM DMA copy.
    y_pipe = flatten(x, materialize=True, method="pipeline")
    y_dma = flatten(x, materialize=True, method="dma")
    jax.block_until_ready((y_pipe, y_dma))

    assert y_view.shape == (2, 4 * 16 * 16), y_view.shape
    assert y_pipe.shape == (2, 4 * 16 * 16), y_pipe.shape
    assert y_dma.shape == (2, 4 * 16 * 16), y_dma.shape
    assert y_pipe.dtype == x.dtype and y_dma.dtype == x.dtype
    assert bool(jnp.array_equal(y_view, y_ref))
    assert bool(jnp.array_equal(y_pipe, y_ref))
    assert bool(jnp.array_equal(y_dma, y_ref))

    print("KERNEL_OK")
</pallas_src>

<mosaic_0001>
module attributes {stable_mosaic.version = 11 : i64} {
  func.func @_copy_kernel(%arg0: i32, %arg1: i32, %arg2: memref<8x256xf32, #tpu.memory_space<vmem>>, %arg3: memref<8x256xf32, #tpu.memory_space<vmem>>) attributes {dimension_semantics = [#tpu.dimension_semantics<parallel>, #tpu.dimension_semantics<parallel>], iteration_bounds = array<i64: 1, 1>, scalar_prefetch = 0 : i64, scratch_operands = 0 : i64, tpu.core_type = #tpu.core_type<tc>, window_params = [{transform_indices = @transform_0, window_bounds = array<i64: 8, 256>}, {transform_indices = @transform_1, window_bounds = array<i64: 8, 256>}]} {
    %c0 = arith.constant 0 : index
    %c0_0 = arith.constant 0 : index
    %0 = vector.load %arg2[%c0, %c0_0] : memref<8x256xf32, #tpu.memory_space<vmem>>, vector<8x256xf32>
    %c0_1 = arith.constant 0 : index
    %c0_2 = arith.constant 0 : index
    %1 = vector.load %arg3[%c0_1, %c0_2] : memref<8x256xf32, #tpu.memory_space<vmem>>, vector<8x256xf32>
    tpu.vector_store %arg3[%c0_1, %c0_2], %0 {strides = array<i32>} : memref<8x256xf32, #tpu.memory_space<vmem>>, vector<8x256xf32>,
    return
  }
  func.func @transform_0(%arg0: i32, %arg1: i32) -> (i32, i32) {
    %c0_i32 = arith.constant 0 : i32
    return %arg0, %arg1 : i32, i32
  }
  func.func @transform_1(%arg0: i32, %arg1: i32) -> (i32, i32) {
    %c0_i32 = arith.constant 0 : i32
    return %arg0, %arg1 : i32, i32
  }
}

</mosaic_0001>

<llo_original>
// kernel: tpu_custom_call.1
$region0: #{tpu_custom_call.1}
  #allocation0 [shape = 'u32[]', space=smem, size = 0x4, offset = 0x4, fixed_abs, tag = 'smem constant byte address 0x4 - core index']
  #allocation1 [shape = 'u32[72,128]{1,0:T(1,128)}', space=vmem, size = 0x9000, scoped, tag = 'internal scratch']
  %s0 = inlined_call_operand.hbm [shape: f32[8,256], index: 0, kind: input, shape index: {}]
  %s1 = inlined_call_operand.hbm [shape: f32[8,256], index: 1, kind: output, shape index: {}]
  %s2 = sld [smem:[#allocation0]]
  $region18: #{tpu_custom_call.1} parent=0
    _
  %s4 = ssub.s32 1, %s2
  %s5 = scalar_select 0, %s4, %s2
  $region1: #{tpu_custom_call.1} parent=0
    #allocation2 [shape = 'u8[8192]{0}', space=vmem, size = 0x2000, scoped, tag = 'input window, operand 0, single buffered']
    #allocation3 [shape = 's32[1]{0}', space=sflag, size = 0x4, scoped, tag = 'scoped memory for tpu_custom_call.1']
    #allocation4 [shape = 's32[1]{0}', space=sflag, size = 0x4, scoped, tag = 'scoped memory for tpu_custom_call.1']
    #allocation5 [shape = 'u8[8192]{0}', space=vmem, size = 0x2000, scoped, tag = 'output window, operand 0, single buffered']
    %6 = vsyncpa [#allocation3], 0
    %7 = vsyncpa [#allocation4], 0
    // Predicated region
    $region2: #{tpu_custom_call.1} parent=1 // pred_check
      _
    $region3: #{tpu_custom_call.1} parent=1 // pred_check_branch
      %9 = sbr.rel (0) target = $region5
    $region4: #{tpu_custom_call.1} parent=1 // pred_region
      %11 = vsyncadd [#allocation3], 0
      %s13 = sshll.u32 %s0, 4
      %s14 = int_to_ptr.hbm [resolvable:$true] %s13
      %s15 = sshll.u32 [#allocation2], 4
      %s16 = int_to_ptr.vmem [resolvable:$true] %s15
      %18 = dma.hbm_to_vmem [thread:$0]  %s14, 256, %s16, [#allocation3]
    $region5: #{tpu_custom_call.1} parent=1 // pred_fallthru
      _
    // Predicated region
    $region6: #{tpu_custom_call.1} parent=1 // pred_check
      _
    $region7: #{tpu_custom_call.1} parent=1 // pred_check_branch
      %20 = sbr.rel (0) target = $region9
    $region8: #{tpu_custom_call.1} parent=1 // pred_region
      %22 = dma.done [#allocation3], 256
    $region9: #{tpu_custom_call.1} parent=1 // pred_fallthru
      _
    %v23 = vld [vmem:[#allocation2] sm:$0xff]
    %v24 = vld [vmem:[#allocation2 + $0x8] sm:$0xff]
    %25 = vst [vmem:[#allocation5] sm:$0xff] %v23
    %26 = vst [vmem:[#allocation5 + $0x8] sm:$0xff] %v24
    // Predicated region
    $region10: #{tpu_custom_call.1} parent=1 // pred_check
      _
    $region11: #{tpu_custom_call.1} parent=1 // pred_check_branch
      %28 = sbr.rel (0) target = $region13
    $region12: #{tpu_custom_call.1} parent=1 // pred_region
      %30 = vsyncadd [#allocation4], 0
      %s32 = sshll.u32 [#allocation5], 4
      %s33 = int_to_ptr.vmem [resolvable:$true] %s32
      %s34 = sshll.u32 %s1, 4
      %s35 = int_to_ptr.hbm [resolvable:$true] %s34
      %37 = dma.vmem_to_hbm [thread:$0]  %s33, 256, %s35, [#allocation4]
    $region13: #{tpu_custom_call.1} parent=1 // pred_fallthru
      _
    // Predicated region
    $region14: #{tpu_custom_call.1} parent=1 // pred_check
      _
    $region15: #{tpu_custom_call.1} parent=1 // pred_check_branch
      %39 = sbr.rel (0) target = $region17
    $region16: #{tpu_custom_call.1} parent=1 // pred_region
      %41 = dma.done [#allocation4], 256
    $region17: #{tpu_custom_call.1} parent=1 // pred_fallthru
      _
    %42 = vsyncpa [#allocation3], 1
    %43 = vsyncpa [#allocation4], 1

</llo_original>
